<compile_context>
chip_gen: v6e
topology: v6e:2x2x1
jax: 0.10.0
libtpu: 0.0.40
codegen_flags: <defaults>
</compile_context>

<pallas_src>
import functools

import jax
import jax.numpy as jnp
from jax import lax
from jax.experimental import pallas as pl
from jax.experimental.pallas import tpu as pltpu

MARGIN = 0.1
EPS = 1e-8  # ATen adds this to each squared norm.


def _ir_loss_kernel(x1_ref, x2_ref, y_ref, out_ref, *, rows_per_block,
                    n_valid_rows, pack, inner_dim):
    """One (TN, pack*inner_dim) tile -> one (8,128) partial-sum tile."""
    x1 = x1_ref[...].astype(jnp.float32)          # (TN, pack*inner_dim)
    x2 = x2_ref[...].astype(jnp.float32)
    y = y_ref[...].astype(jnp.float32)            # (TN, pack)

    # Lane-dense VPU products (computed once at full width).
    p12 = x1 * x2
    p11 = x1 * x1
    p22 = x2 * x2

    if n_valid_rows is not None:
        # Ragged tail block: rows past the end of the array hold whatever the
        # clipped DMA left behind; zero their contribution.
        row_ids = (pl.program_id(0) * rows_per_block
                   + lax.broadcasted_iota(jnp.int32, (rows_per_block, 1), 0))
        valid = row_ids < n_valid_rows            # (TN, 1)
    else:
        valid = None

    total = jnp.float32(0.0)
    for k in range(pack):                         # pack is a small static int
        lo, hi = k * inner_dim, (k + 1) * inner_dim
        w12 = jnp.sum(p12[:, lo:hi], axis=-1, keepdims=True)   # (TN, 1)
        w1 = jnp.sum(p11[:, lo:hi], axis=-1, keepdims=True)
        w2 = jnp.sum(p22[:, lo:hi], axis=-1, keepdims=True)
        yk = y[:, k:k + 1]                                      # (TN, 1)

        # cos = w12 / sqrt((w1+eps)(w2+eps)); rsqrt lands on the EUP slot.
        cos = w12 * lax.rsqrt((w1 + EPS) * (w2 + EPS))
        per = jnp.where(yk > 0.0, 1.0 - cos,
                        jnp.maximum(cos - MARGIN, 0.0))         # (TN, 1)
        if valid is not None:
            per = jnp.where(valid, per, 0.0)
        total = total + jnp.sum(per)

    # Lane-dense (8,128) unmasked store: partial at [0,0], zeros elsewhere,
    # so the wrapper epilogue is a plain dense sum (no strided slice).
    r_id = lax.broadcasted_iota(jnp.int32, (8, 128), 0)
    c_id = lax.broadcasted_iota(jnp.int32, (8, 128), 1)
    out_ref[...] = jnp.where((r_id == 0) & (c_id == 0), total, 0.0)


def _round_up(x, m):
    return ((x + m - 1) // m) * m


def _vmem_limit_bytes():
    """Generation-aware scoped-VMEM limit (v7x has only 64 MiB physical)."""
    phys = 128 * 1024 * 1024
    try:
        info = pltpu.get_tpu_info()
        phys = int(getattr(info, "vmem_capacity_bytes", phys)) or phys
    except Exception:
        pass
    if phys <= 64 * 1024 * 1024:
        return 48 * 1024 * 1024       # v7x-class
    return 64 * 1024 * 1024           # v5e / v6e (128 MiB physical)


def ir_loss(x1, x2, y, *, block_rows=None):
    """IRLoss.forward.

    x1, x2: (N, D) embeddings -> output['ir'][0], output['ir'][1]
    y:      (N,) labels in {+1, -1} -> target['ir']
    Returns the scalar float32 mean CosineEmbeddingLoss (margin=0.1).
    """
    N, D = x1.shape
    assert x2.shape == (N, D) and y.shape == (N,)
    itemsize = jnp.dtype(x1.dtype).itemsize
    row_mult = max(8, 32 // itemsize)          # 8 f32 / 16 bf16 / 32 int8

    # --- D < 128 row packing: fold r rows into one 128-lane row with a free
    #     layout-preserving reshape so HBM/VMEM/VPU traffic is lane-dense.
    pack = 1
    if D < 128 and 128 % D == 0:
        r = 128 // D
        if r <= 16 and N % r == 0 and (N // r) >= row_mult:
            pack = r
    # TODO(synk): partial packing (packed main body + tiny pure-JAX tail) when
    # N % (128 // D) != 0, to avoid any full-array copy while still packing.

    n_rows = N // pack
    d_eff = D * pack
    x1p = x1.reshape(n_rows, d_eff)
    x2p = x2.reshape(n_rows, d_eff)
    yp = y.reshape(n_rows, pack).astype(jnp.float32)

    # --- Tile sizing: biggest block whose double-buffered inputs + in-kernel
    #     f32 temporaries fit inside ~half the scoped-VMEM limit.
    vmem_limit = _vmem_limit_bytes()
    d_pad = _round_up(d_eff, 128)              # VMEM lane padding
    per_row_bytes = (4 * d_pad * itemsize      # x1/x2 x 2 pipeline buffers
                     + 4 * d_pad * 4           # f32 upcasts + live products
                     + 8 * 128 * 4)            # y buffers + (TN,*) temporaries
    if block_rows is None:
        block_rows = (vmem_limit // 2) // per_row_bytes
    block_rows = max(row_mult, (block_rows // row_mult) * row_mult)
    block_rows = min(block_rows, 8192)
    # Keep the 'parallel' grid axis at >= 2 steps so both v7x TensorCores get
    # work; costs one extra ~0.35us grid step on single-TC chips.
    if n_rows >= 2 * row_mult:
        block_rows = min(block_rows, _round_up(pl.cdiv(n_rows, 2), row_mult))
    if block_rows >= n_rows:
        block_rows = n_rows                    # single full-extent block

    grid_n = pl.cdiv(n_rows, block_rows)
    ragged = (grid_n * block_rows) != n_rows

    kernel = functools.partial(
        _ir_loss_kernel,
        rows_per_block=block_rows,
        n_valid_rows=n_rows if ragged else None,
        pack=pack,
        inner_dim=D,
    )

    # TODO(synk): on v7x, sweep pipeline_mode=pl.Buffered(3) on the x1/x2
    # in_specs once a trace shows exposed double-buffer turnaround.
    partials = pl.pallas_call(
        kernel,
        out_shape=jax.ShapeDtypeStruct((grid_n * 8, 128), jnp.float32),
        grid=(grid_n,),
        in_specs=[
            pl.BlockSpec((block_rows, d_eff), lambda i: (i, 0)),
            pl.BlockSpec((block_rows, d_eff), lambda i: (i, 0)),
            pl.BlockSpec((block_rows, pack), lambda i: (i, 0)),
        ],
        out_specs=pl.BlockSpec((8, 128), lambda i: (i, 0)),
        compiler_params=pltpu.CompilerParams(
            dimension_semantics=("parallel",),
            vmem_limit_bytes=vmem_limit,
        ),
    )(x1p, x2p, yp)

    # Each block wrote its partial at [0,0] of its tile, zeros elsewhere.
    return jnp.sum(partials) / N


def ir_loss_ref(x1, x2, y):
    """Pure-JAX reference mirroring torch.nn.CosineEmbeddingLoss (ATen eps)."""
    x1 = x1.astype(jnp.float32)
    x2 = x2.astype(jnp.float32)
    w12 = jnp.sum(x1 * x2, axis=-1)
    w1 = jnp.sum(x1 * x1, axis=-1)
    w2 = jnp.sum(x2 * x2, axis=-1)
    cos = w12 * lax.rsqrt((w1 + EPS) * (w2 + EPS))
    per = jnp.where(y > 0.0, 1.0 - cos, jnp.maximum(cos - MARGIN, 0.0))
    return jnp.mean(per)


if __name__ == "__main__":
    # No learnable parameters (just the criterion); deterministic synthetic
    # inputs for output['ir'][0/1] and target['ir'].
    key = jax.random.PRNGKey(0)
    k1, k2, k3 = jax.random.split(key, 3)

    # Canonical small case: batch of 8 embedding pairs, hidden = 32.
    N, D = 8, 32
    x1 = jax.random.normal(k1, (N, D), dtype=jnp.float32)     # output['ir'][0]
    x2 = jax.random.normal(k2, (N, D), dtype=jnp.float32)     # output['ir'][1]
    y = jnp.where(jax.random.bernoulli(k3, 0.5, (N,)), 1.0, -1.0)  # target['ir']
    loss = jax.block_until_ready(ir_loss(x1, x2, y))
    ref = ir_loss_ref(x1, x2, y)
    assert jnp.allclose(loss, ref, atol=1e-5, rtol=1e-5), (loss, ref)

    # Multi-block, ragged-tail bf16 path (in-kernel masking, no jnp.pad).
    N2, D2 = 300, 256
    a = jax.random.normal(k1, (N2, D2), dtype=jnp.bfloat16)
    b = jax.random.normal(k2, (N2, D2), dtype=jnp.bfloat16)
    y2 = jnp.where(jax.random.bernoulli(k3, 0.5, (N2,)), 1.0, -1.0)
    loss2 = jax.block_until_ready(ir_loss(a, b, y2))
    ref2 = ir_loss_ref(a, b, y2)
    assert jnp.allclose(loss2, ref2, atol=1e-4, rtol=1e-4), (loss2, ref2)

    # D < 128 lane-packed path with a ragged packed tail (multi-block grid).
    N3, D3 = 100, 32
    c = jax.random.normal(k1, (N3, D3), dtype=jnp.float32)
    d = jax.random.normal(k2, (N3, D3), dtype=jnp.float32)
    y3 = jnp.where(jax.random.bernoulli(k3, 0.5, (N3,)), 1.0, -1.0)
    loss3 = jax.block_until_ready(ir_loss(c, d, y3))
    ref3 = ir_loss_ref(c, d, y3)
    assert jnp.allclose(loss3, ref3, atol=1e-5, rtol=1e-5), (loss3, ref3)

    print("KERNEL_OK")
</pallas_src>

<mosaic_0001>
module attributes {stable_mosaic.version = 11 : i64} {
  func.func @_ir_loss_kernel(%arg0: i32, %arg1: memref<8x32xf32, #tpu.memory_space<vmem>>, %arg2: memref<8x32xf32, #tpu.memory_space<vmem>>, %arg3: memref<8x1xf32, #tpu.memory_space<vmem>>, %arg4: memref<8x128xf32, #tpu.memory_space<vmem>>) attributes {dimension_semantics = [#tpu.dimension_semantics<parallel>], iteration_bounds = array<i64: 1>, scalar_prefetch = 0 : i64, scratch_operands = 0 : i64, tpu.core_type = #tpu.core_type<tc>, window_params = [{transform_indices = @transform_0, window_bounds = array<i64: 8, 32>}, {transform_indices = @transform_1, window_bounds = array<i64: 8, 32>}, {transform_indices = @transform_2, window_bounds = array<i64: 8, 1>}, {transform_indices = @transform_3, window_bounds = array<i64: 8, 128>}]} {
    %c0 = arith.constant 0 : index
    %c0_0 = arith.constant 0 : index
    %0 = vector.load %arg1[%c0, %c0_0] : memref<8x32xf32, #tpu.memory_space<vmem>>, vector<8x32xf32>
    %c0_1 = arith.constant 0 : index
    %c0_2 = arith.constant 0 : index
    %1 = vector.load %arg2[%c0_1, %c0_2] : memref<8x32xf32, #tpu.memory_space<vmem>>, vector<8x32xf32>
    %c0_3 = arith.constant 0 : index
    %c0_4 = arith.constant 0 : index
    %2 = vector.load %arg3[%c0_3, %c0_4] : memref<8x1xf32, #tpu.memory_space<vmem>>, vector<8x1xf32>
    %3 = arith.mulf %0, %1 : vector<8x32xf32>
    %4 = arith.mulf %0, %0 : vector<8x32xf32>
    %5 = arith.mulf %1, %1 : vector<8x32xf32>
    %cst = arith.constant dense<0.000000e+00> : vector<8xf32>
    %6 = vector.multi_reduction <add>, %3, %cst [1] : vector<8x32xf32> to vector<8xf32>
    %7 = vector.shape_cast %6 : vector<8xf32> to vector<8x1xf32>
    %cst_5 = arith.constant dense<0.000000e+00> : vector<8xf32>
    %8 = vector.multi_reduction <add>, %4, %cst_5 [1] : vector<8x32xf32> to vector<8xf32>
    %9 = vector.shape_cast %8 : vector<8xf32> to vector<8x1xf32>
    %cst_6 = arith.constant dense<0.000000e+00> : vector<8xf32>
    %10 = vector.multi_reduction <add>, %5, %cst_6 [1] : vector<8x32xf32> to vector<8xf32>
    %11 = vector.shape_cast %10 : vector<8xf32> to vector<8x1xf32>
    %cst_7 = arith.constant 9.99999993E-9 : f32
    %12 = vector.broadcast %cst_7 : f32 to vector<8x1xf32>
    %13 = arith.addf %9, %12 : vector<8x1xf32>
    %cst_8 = arith.constant 9.99999993E-9 : f32
    %14 = vector.broadcast %cst_8 : f32 to vector<8x1xf32>
    %15 = arith.addf %11, %14 : vector<8x1xf32>
    %16 = arith.mulf %13, %15 : vector<8x1xf32>
    %17 = math.rsqrt %16 : vector<8x1xf32>
    %18 = arith.mulf %7, %17 : vector<8x1xf32>
    %cst_9 = arith.constant 0.000000e+00 : f32
    %19 = vector.broadcast %cst_9 : f32 to vector<8x1xf32>
    %20 = arith.cmpf ogt, %2, %19 : vector<8x1xf32>
    %cst_10 = arith.constant 1.000000e+00 : f32
    %21 = vector.broadcast %cst_10 : f32 to vector<8x1xf32>
    %22 = arith.subf %21, %18 : vector<8x1xf32>
    %cst_11 = arith.constant 1.000000e-01 : f32
    %23 = vector.broadcast %cst_11 : f32 to vector<8x1xf32>
    %24 = arith.subf %18, %23 : vector<8x1xf32>
    %cst_12 = arith.constant 0.000000e+00 : f32
    %25 = vector.broadcast %cst_12 : f32 to vector<8x1xf32>
    %26 = arith.maximumf %24, %25 : vector<8x1xf32>
    %27 = arith.select %20, %22, %26 : vector<8x1xi1>, vector<8x1xf32>
    %28 = vector.shape_cast %27 : vector<8x1xf32> to vector<1x8x1xf32>
    %cst_13 = arith.constant dense<0.000000e+00> : vector<1xf32>
    %29 = vector.multi_reduction <add>, %28, %cst_13 [1, 2] : vector<1x8x1xf32> to vector<1xf32>
    %30 = vector.shape_cast %29 : vector<1xf32> to vector<1x1x1xf32>
    %31 = vector.extract %30[0, 0, 0] : f32 from vector<1x1x1xf32>
    %cst_14 = arith.constant 0.000000e+00 : f32
    %32 = arith.addf %cst_14, %31 : f32
    %33 = tpu.iota {dimensions = array<i32: 0>} : vector<8x128xi32>
    %34 = tpu.iota {dimensions = array<i32: 1>} : vector<8x128xi32>
    %c0_i32 = arith.constant 0 : i32
    %35 = vector.broadcast %c0_i32 : i32 to vector<8x128xi32>
    %36 = arith.cmpi eq, %33, %35 : vector<8x128xi32>
    %c0_i32_15 = arith.constant 0 : i32
    %37 = vector.broadcast %c0_i32_15 : i32 to vector<8x128xi32>
    %38 = arith.cmpi eq, %34, %37 : vector<8x128xi32>
    %39 = arith.andi %36, %38 : vector<8x128xi1>
    %cst_16 = arith.constant 0.000000e+00 : f32
    %40 = vector.broadcast %32 : f32 to vector<8x128xf32>
    %41 = vector.broadcast %cst_16 : f32 to vector<8x128xf32>
    %42 = arith.select %39, %40, %41 : vector<8x128xi1>, vector<8x128xf32>
    %c0_17 = arith.constant 0 : index
    %c0_18 = arith.constant 0 : index
    %43 = vector.load %arg4[%c0_17, %c0_18] : memref<8x128xf32, #tpu.memory_space<vmem>>, vector<8x128xf32>
    tpu.vector_store %arg4[%c0_17, %c0_18], %42 {strides = array<i32>} : memref<8x128xf32, #tpu.memory_space<vmem>>, vector<8x128xf32>,
    return
  }
  func.func @transform_0(%arg0: i32) -> (i32, i32) {
    %c0_i32 = arith.constant 0 : i32
    %c0_i32_0 = arith.constant 0 : i32
    return %arg0, %c0_i32 : i32, i32
  }
  func.func @transform_1(%arg0: i32) -> (i32, i32) {
    %c0_i32 = arith.constant 0 : i32
    %c0_i32_0 = arith.constant 0 : i32
    return %arg0, %c0_i32 : i32, i32
  }
  func.func @transform_2(%arg0: i32) -> (i32, i32) {
    %c0_i32 = arith.constant 0 : i32
    %c0_i32_0 = arith.constant 0 : i32
    return %arg0, %c0_i32 : i32, i32
  }
  func.func @transform_3(%arg0: i32) -> (i32, i32) {
    %c0_i32 = arith.constant 0 : i32
    %c0_i32_0 = arith.constant 0 : i32
    return %arg0, %c0_i32 : i32, i32
  }
}

</mosaic_0001>

<llo_original>
// kernel: tpu_custom_call.1
$region0: #{tpu_custom_call.1}
  #allocation0 [shape = 'u32[]', space=smem, size = 0x4, offset = 0x4, fixed_abs, tag = 'smem constant byte address 0x4 - core index']
  #allocation1 [shape = 'u32[144,128]{1,0:T(1,128)}', space=vmem, size = 0x12000, scoped, tag = 'internal scratch']
  %s0 = inlined_call_operand.vmem [shape: f32[8,32], index: 0, kind: input, shape index: {}]
  %s1 = inlined_call_operand.hbm [shape: f32[8,32], index: 1, kind: input, shape index: {}]
  %s2 = inlined_call_operand.vmem [shape: f32[8,1], index: 2, kind: input, shape index: {}]
  %s3 = inlined_call_operand.hbm [shape: f32[8,128], index: 3, kind: output, shape index: {}]
  %s4 = sld [smem:[#allocation0]]
  $region26: #{tpu_custom_call.1} parent=0
    _
  %s6 = ssub.s32 1, %s4
  %s7 = scalar_select 0, %s6, %s4
  $region1: #{tpu_custom_call.1} parent=0
    #allocation2 [shape = 'u8[4096]{0}', space=vmem, size = 0x1000, scoped, tag = 'input window, operand 1, single buffered']
    #allocation3 [shape = 's32[1]{0}', space=sflag, size = 0x4, scoped, tag = 'scoped memory for tpu_custom_call.1']
    #allocation4 [shape = 's32[1]{0}', space=sflag, size = 0x4, scoped, tag = 'scoped memory for tpu_custom_call.1']
    #allocation5 [shape = 'u8[4096]{0}', space=vmem, size = 0x1000, scoped, tag = 'output window, operand 0, single buffered']
    %8 = vsyncpa [#allocation3], 0
    %9 = vsyncpa [#allocation4], 0
    // Predicated region
    $region2: #{tpu_custom_call.1} parent=1 // pred_check
      _
    $region3: #{tpu_custom_call.1} parent=1 // pred_check_branch
      %11 = sbr.rel (0) target = $region5
    $region4: #{tpu_custom_call.1} parent=1 // pred_region
      _
    $region5: #{tpu_custom_call.1} parent=1 // pred_fallthru
      _
    // Predicated region
    $region6: #{tpu_custom_call.1} parent=1 // pred_check
      _
    $region7: #{tpu_custom_call.1} parent=1 // pred_check_branch
      %13 = sbr.rel (0) target = $region9
    $region8: #{tpu_custom_call.1} parent=1 // pred_region
      %s15 = ssub.s32 128, 128
      %16 = vsyncadd [#allocation3], %s15
      %s18 = sshll.u32 [#allocation2], 4
      %s19 = int_to_ptr.vmem [resolvable:$true] %s18
      %21 = dma.hbm_to_vmem [thread:$0]  %s1, 128, %s19, [#allocation3]
    $region9: #{tpu_custom_call.1} parent=1 // pred_fallthru
      _
    // Predicated region
    $region10: #{tpu_custom_call.1} parent=1 // pred_check
      _
    $region11: #{tpu_custom_call.1} parent=1 // pred_check_branch
      %23 = sbr.rel (0) target = $region13
    $region12: #{tpu_custom_call.1} parent=1 // pred_region
      _
    $region13: #{tpu_custom_call.1} parent=1 // pred_fallthru
      _
    // Predicated region
    $region14: #{tpu_custom_call.1} parent=1 // pred_check
      _
    $region15: #{tpu_custom_call.1} parent=1 // pred_check_branch
      %25 = sbr.rel (0) target = $region17
    $region16: #{tpu_custom_call.1} parent=1 // pred_region
      %26 = dma.done [#allocation3], 128
    $region17: #{tpu_custom_call.1} parent=1 // pred_fallthru
      _
    %v27 = vld [vmem:[%s0] sm:$0xff]
    %v28 = vld [vmem:[#allocation2] sm:$0xff]
    %v29 = vld [vmem:[%s2] sm:$0xff]
    %v30 = vmul.f32 %v27, %v28
    %v31 = vmul.f32 %v27, %v27
    %v32 = vmul.f32 %v28, %v28
    %vm33 = vcmask 261120
    %v34 = vsel %vm33, %v30, 0.0
    %35 = vadd.xlane.f32.xlu0 %v34
    %v36 = vpop.xlane.xlu0 %35
    %v37 = vsel %vm33, %v31, 0.0
    %38 = vadd.xlane.f32.xlu0 %v37
    %v39 = vpop.xlane.xlu0 %38
    %v40 = vsel %vm33, %v32, 0.0
    %41 = vadd.xlane.f32.xlu0 %v40
    %v42 = vpop.xlane.xlu0 %41
    %v43 = vadd.f32 %v39, 1e-08
    %v44 = vadd.f32 %v42, 1e-08
    %v45 = vmul.f32 %v43, %v44
    %v46 = vrsqrt.pop %v45
    %v47 = vmul.f32 %v36, %v46
    %vm48 = vcmp.gt.f32.partialorder %v29, 0.0
    %v49 = vsub.f32 1.0, %v47
    %v50 = vsub.f32 %v47, 0.1
    %v51 = vmax.f32 %v50, 0.0
    %v52 = vsel %vm48, %v49, %v51
    %vm53 = vcmask 7168
    %v54 = vsel %vm53, %v52, 0.0
    %55 = vadd.xlane.f32.xlu0 %v54
    %v56 = vpop.xlane.xlu0 %55
    %v57 = vrot.slane %v56, 4
    %v58 = vadd.f32 %v56, %v57
    %v59 = vrot.slane %v58, 2
    %v60 = vadd.f32 %v58, %v59
    %v61 = vrot.slane %v60, 1
    %v62 = vadd.f32 %v60, %v61
    %s63 = vtos %v62
    %s64 = sadd.f32 %s63, 0.0
    %v65 = vlaneseq
    %v66 = vshrl.u32 %v65, 7
    %v67 = vlaneseq
    %v68 = vand.u32 %v67, 127
    %vm69 = vcmp.eq.s32.totalorder %v66, 0
    %vm70 = vcmp.eq.s32.totalorder %v68, 0
    %vm71 = vmand %vm69, %vm70
    %v72 = vstv %s64
    %v73 = vsel %vm71, %v72, 0.0
    %74 = vst [vmem:[#allocation5] sm:$0xff] %v73
    // Predicated region
    $region18: #{tpu_custom_call.1} parent=1 // pred_check
      _
    $region19: #{tpu_custom_call.1} parent=1 // pred_check_branch
      %76 = sbr.rel (0) target = $region21
    $region20: #{tpu_custom_call.1} parent=1 // pred_region
      %s78 = ssub.s32 128, 128
      %79 = vsyncadd [#allocation4], %s78
      %s81 = sshll.u32 [#allocation5], 4
      %s82 = int_to_ptr.vmem [resolvable:$true] %s81
      %84 = dma.vmem_to_hbm [thread:$0]  %s82, 128, %s3, [#allocation4]
    $region21: #{tpu_custom_call.1} parent=1 // pred_fallthru
      _
    // Predicated region
    $region22: #{tpu_custom_call.1} parent=1 // pred_check
      _
    $region23: #{tpu_custom_call.1} parent=1 // pred_check_branch
      %86 = sbr.rel (0) target = $region25
    $region24: #{tpu_custom_call.1} parent=1 // pred_region
      %87 = dma.done [#allocation4], 128
    $region25: #{tpu_custom_call.1} parent=1 // pred_fallthru
      _
    %88 = vsyncpa [#allocation3], 1
    %89 = vsyncpa [#allocation4], 1

</llo_original>
